<compile_context>
chip_gen: v5e
topology: v5e:2x2
jax: 0.10.0
libtpu: 0.0.40
codegen_flags: <defaults>
</compile_context>

<pallas_src>
import math

import jax
import jax.numpy as jnp
from jax.experimental import pallas as pl
from jax.experimental.pallas import tpu as pltpu

CH = 3          # ColorSpace.RGB -> 3 channels per stacked frame
BLUR_K = 3      # GaussianBlur kernel size
BLUR_SIGMA = 1.0


def _gauss_taps(ksize: int, sigma: float):
    half = ksize // 2
    v = [math.exp(-(i * i) / (2.0 * sigma * sigma)) for i in range(-half, half + 1)]
    s = sum(v)
    return [x / s for x in v]


_G1 = _gauss_taps(BLUR_K, BLUR_SIGMA)                          # separable 1-D taps
_GAUSS2D = [[_G1[i] * _G1[j] for j in range(BLUR_K)] for i in range(BLUR_K)]  # ref only


def _aug_kernel(br_ref, ct_ref, x_ref, out_ref, s1_ref, s2_ref):
    """Photometric augmentation on a native-layout [TB, H, W] block.

    br_ref, ct_ref : VMEM f32[TB, 1, 1]    per frame-channel jitter factors
    x_ref, out_ref : VMEM    [TB, H, W]    image block (W on lanes, H on sublanes)
    s1_ref         : VMEM f32[TB, H+2, W]  vertical reflect-halo scratch
    s2_ref         : VMEM f32[TB, H, W+2]  horizontal reflect-halo scratch
    """
    h = out_ref.shape[1]
    w = out_ref.shape[2]
    g0 = jnp.float32(_G1[0])
    g1 = jnp.float32(_G1[1])
    g2 = jnp.float32(_G1[2])

    # ColorJitter-style: contrast scale + brightness shift, clamp to [0, 1].
    x = x_ref[...].astype(jnp.float32)
    jit = jnp.clip(x * ct_ref[...] + br_ref[...], 0.0, 1.0)

    # --- Separable 3x3 Gaussian blur, reflect ("mirror") borders. ---
    # Vertical pass: write the jittered block ONCE into an (H+2)-row halo
    # scratch; the two reflect rows are thin copies read back off the scratch,
    # and the 3 taps read offset slices directly from the ref (no concatenate
    # copies, no full-scratch reload).
    s1_ref[:, 1:h + 1, :] = jit
    s1_ref[:, 0:1, :] = s1_ref[:, 2:3, :]                  # row -1  := row 1
    s1_ref[:, h + 1:h + 2, :] = s1_ref[:, h - 1:h, :]      # row  h  := row h-2
    v = (g0 * s1_ref[:, 0:h, :]
         + g1 * s1_ref[:, 1:h + 1, :]
         + g2 * s1_ref[:, 2:h + 2, :])

    # Horizontal pass: same trick along the lane axis with a (W+2)-col halo.
    # TODO(synk): if the two 1-lane halo stores show up as vst pressure in a
    # v5e bundle dump, switch this pass to pltpu.roll(+-1) + boundary selects
    # on the otherwise-idle XLU slot.
    s2_ref[:, :, 1:w + 1] = v
    s2_ref[:, :, 0:1] = s2_ref[:, :, 2:3]                  # col -1  := col 1
    s2_ref[:, :, w + 1:w + 2] = s2_ref[:, :, w - 1:w]      # col  w  := col w-2
    out = (g0 * s2_ref[:, :, 0:w]
           + g1 * s2_ref[:, :, 1:w + 1]
           + g2 * s2_ref[:, :, 2:w + 2])

    out_ref[...] = out.astype(out_ref.dtype)


def _vmem_limit_bytes():
    """Generation-aware scoped-VMEM limit: ~96 MiB on 128-MiB parts (v5e/v6e),
    48 MiB on v7x (64 MiB per TensorCore).  Falls back conservatively."""
    try:
        cap = pltpu.get_tpu_info().vmem_capacity_bytes
    except Exception:
        cap = 64 * 1024 * 1024
    return (96 if cap >= 100 * 1024 * 1024 else 48) * 1024 * 1024


def _choose_batch_block(L, H, W, in_itemsize, budget_bytes):
    """Largest divisor of L whose estimated per-block VMEM footprint fits the
    budget, preferring >= 4 grid steps so double-buffering and v7x megacore
    sharding have work (unless that makes blocks trivially small)."""
    def rup(a, m):
        return (a + m - 1) // m * m

    pad_hw = rup(H, 8) * rup(W, 128)
    pad_h2w = rup(H + 2, 8) * rup(W, 128)
    pad_hw2 = rup(H, 8) * rup(W + 2, 128)
    # Per frame-channel VMEM bytes: double-buffered in + out, two f32 halo
    # scratches, ~3 live f32 temporaries, double-buffered (1,1)-tile factors.
    per = (4 * pad_hw * in_itemsize
           + 4 * (pad_h2w + pad_hw2)
           + 3 * 4 * pad_hw
           + 4 * 8 * 128 * 4)

    cap = max(1, budget_bytes // per)
    # TODO(synk): for very large images (per > budget even at tb=1) add an
    # H-tiled grid axis with a 1-row halo instead of relying on a tb=1 block.
    want = min(cap, L)
    if L >= 4 and (L // 4) * per >= (1 << 20):
        want = min(want, L // 4)
    for tb in range(max(1, want), 0, -1):
        if L % tb == 0:
            return tb
    return 1


def _apply_kornia_ops_pallas(frames, brightness, contrast):
    """frames: float[B, C, H, W]; brightness/contrast: float[B] (one per frame)."""
    B, C, H, W = frames.shape
    L = B * C

    # Native layout: pure (free) reshape, no transpose, no extra HBM pass.
    x = frames.reshape(L, H, W)
    # One factor per frame, shared by that frame's C channels.
    br = jnp.repeat(brightness.astype(jnp.float32), C).reshape(L, 1, 1)
    ct = jnp.repeat(contrast.astype(jnp.float32), C).reshape(L, 1, 1)

    vmem_limit = _vmem_limit_bytes()
    tb = _choose_batch_block(L, H, W, jnp.dtype(frames.dtype).itemsize,
                             budget_bytes=(vmem_limit * 3) // 4)
    grid = (L // tb,)

    out = pl.pallas_call(
        _aug_kernel,
        out_shape=jax.ShapeDtypeStruct((L, H, W), frames.dtype),
        grid=grid,
        in_specs=[
            pl.BlockSpec((tb, 1, 1), lambda b: (b, 0, 0)),   # brightness / frame-ch
            pl.BlockSpec((tb, 1, 1), lambda b: (b, 0, 0)),   # contrast   / frame-ch
            pl.BlockSpec((tb, H, W), lambda b: (b, 0, 0)),   # image block
        ],
        out_specs=pl.BlockSpec((tb, H, W), lambda b: (b, 0, 0)),
        scratch_shapes=[
            pltpu.VMEM((tb, H + 2, W), jnp.float32),         # vertical halo
            pltpu.VMEM((tb, H, W + 2), jnp.float32),         # horizontal halo
        ],
        compiler_params=pltpu.CompilerParams(
            dimension_semantics=("parallel",),               # independent frame-channels
            vmem_limit_bytes=vmem_limit,
        ),
    )(br, ct, x)

    return out.reshape(B, C, H, W)


class KorniaAugmentationsPallas:
    """Pallas port of KorniaAugmentations.

    color_space = RGB (3 channels per stacked frame).
    kornia_ops  = [ColorJitter-style(brightness, contrast), GaussianBlur(3x3, sigma=1)]
    Works for any floating frame dtype (e.g. bf16 frames are DMA'd narrow and
    widened to f32 inside the kernel, halving HBM bytes).
    """

    def __init__(self, temporally_consistent: bool = False):
        self.temporally_consistent = temporally_consistent
        self.channels_per_frame = CH
        # TODO(synk): arbitrary user-supplied kornia_ops (random crops, affine
        # warps, etc.) have no generic Pallas translation; only the fixed
        # photometric pipeline above is implemented in-kernel.

    def __call__(self, images, brightness, contrast):
        # shape / dtype sanity checks (mirrors the torch forward)
        if images.ndim != 4 or not jnp.issubdtype(images.dtype, jnp.floating):
            raise ValueError(
                f"Images of shape '{images.shape}' and type '{images.dtype}' "
                "do not have rank 4 and floating point type"
            )
        n, c, h, w = images.shape
        assert h >= 3 and w >= 3, "3x3 reflect blur requires H, W >= 3"

        if not self.temporally_consistent:
            assert c % self.channels_per_frame == 0, "channel dim must be 3*F"
            f = c // self.channels_per_frame
            # split_unsplit_channel_stack: [N, F*ch, H, W] -> [N*F, ch, H, W]
            frames = images.reshape(n * f, self.channels_per_frame, h, w)
            units = n * f
        else:
            frames = images  # one factor per sample, shared across stacked frames
            units = n
        assert brightness.shape == (units,) and contrast.shape == (units,), (
            "augmentation factors must have one entry per "
            + ("frame (N*F)" if not self.temporally_consistent else "sample (N)"))

        out = _apply_kornia_ops_pallas(frames, brightness, contrast)
        return out.reshape(n, c, h, w)   # unsplit (no-op when temporally consistent)


def _reference(images, brightness, contrast):
    """Pure-JAX reference (direct 2-D 9-tap blur) for validation."""
    n, c, h, w = images.shape
    f = c // CH
    x = images.reshape(n * f, CH, h, w)
    x = jnp.clip(x * contrast.reshape(-1, 1, 1, 1) + brightness.reshape(-1, 1, 1, 1),
                 0.0, 1.0)
    xp = jnp.pad(x, ((0, 0), (0, 0), (1, 1), (1, 1)), mode="reflect")
    out = jnp.zeros_like(x)
    for dy in range(BLUR_K):
        for dx in range(BLUR_K):
            out = out + jnp.float32(_GAUSS2D[dy][dx]) * xp[:, :, dy:dy + h, dx:dx + w]
    return out.reshape(n, c, h, w)


if __name__ == "__main__":
    N, F, H, W = 2, 2, 16, 16                   # stacked RGB frames -> C = 3*F = 6
    key = jax.random.PRNGKey(0)
    k_img, k_b, k_c = jax.random.split(key, 3)

    images = jax.random.uniform(k_img, (N, F * CH, H, W), dtype=jnp.float32)
    # deterministic per-frame augmentation parameters (independent per frame,
    # matching temporally_consistent=False)
    brightness = jax.random.uniform(k_b, (N * F,), minval=-0.1, maxval=0.1,
                                    dtype=jnp.float32)
    contrast = jax.random.uniform(k_c, (N * F,), minval=0.9, maxval=1.1,
                                  dtype=jnp.float32)

    aug = KorniaAugmentationsPallas(temporally_consistent=False)
    out = jax.block_until_ready(aug(images, brightness, contrast))

    assert out.shape == images.shape
    assert out.dtype == images.dtype

    ref = jax.block_until_ready(_reference(images, brightness, contrast))
    max_err = float(jnp.max(jnp.abs(out - ref)))
    assert jnp.allclose(out, ref, atol=1e-5, rtol=1e-5), f"max err {max_err}"

    print("KERNEL_OK")
</pallas_src>

<mosaic_0001>
module attributes {stable_mosaic.version = 11 : i64} {
  func.func @_aug_kernel(%arg0: i32, %arg1: memref<12x1x1xf32, #tpu.memory_space<vmem>>, %arg2: memref<12x1x1xf32, #tpu.memory_space<vmem>>, %arg3: memref<12x16x16xf32, #tpu.memory_space<vmem>>, %arg4: memref<12x16x16xf32, #tpu.memory_space<vmem>>, %arg5: memref<12x18x16xf32, #tpu.memory_space<vmem>>, %arg6: memref<12x16x18xf32, #tpu.memory_space<vmem>>) attributes {dimension_semantics = [#tpu.dimension_semantics<parallel>], iteration_bounds = array<i64: 1>, scalar_prefetch = 0 : i64, scratch_operands = 2 : i64, tpu.core_type = #tpu.core_type<tc>, window_params = [{transform_indices = @transform_0, window_bounds = array<i64: 12, 1, 1>}, {transform_indices = @transform_1, window_bounds = array<i64: 12, 1, 1>}, {transform_indices = @transform_2, window_bounds = array<i64: 12, 16, 16>}, {transform_indices = @transform_3, window_bounds = array<i64: 12, 16, 16>}]} {
    %c0 = arith.constant 0 : index
    %c0_0 = arith.constant 0 : index
    %c0_1 = arith.constant 0 : index
    %0 = vector.load %arg3[%c0, %c0_0, %c0_1] : memref<12x16x16xf32, #tpu.memory_space<vmem>>, vector<12x16x16xf32>
    %c0_2 = arith.constant 0 : index
    %c0_3 = arith.constant 0 : index
    %c0_4 = arith.constant 0 : index
    %1 = vector.load %arg2[%c0_2, %c0_3, %c0_4] : memref<12x1x1xf32, #tpu.memory_space<vmem>>, vector<12x1x1xf32>
    %2 = vector.broadcast %1 : vector<12x1x1xf32> to vector<12x16x16xf32>
    %3 = arith.mulf %0, %2 : vector<12x16x16xf32>
    %c0_5 = arith.constant 0 : index
    %c0_6 = arith.constant 0 : index
    %c0_7 = arith.constant 0 : index
    %4 = vector.load %arg1[%c0_5, %c0_6, %c0_7] : memref<12x1x1xf32, #tpu.memory_space<vmem>>, vector<12x1x1xf32>
    %5 = vector.broadcast %4 : vector<12x1x1xf32> to vector<12x16x16xf32>
    %6 = arith.addf %3, %5 : vector<12x16x16xf32>
    %cst = arith.constant 0.000000e+00 : f32
    %cst_8 = arith.constant 1.000000e+00 : f32
    %7 = vector.broadcast %cst : f32 to vector<12x16x16xf32>
    %8 = arith.maximumf %7, %6 : vector<12x16x16xf32>
    %9 = vector.broadcast %cst_8 : f32 to vector<12x16x16xf32>
    %10 = arith.minimumf %9, %8 : vector<12x16x16xf32>
    %c0_9 = arith.constant 0 : index
    %c1 = arith.constant 1 : index
    %c0_10 = arith.constant 0 : index
    %11 = vector.load %arg5[%c0_9, %c1, %c0_10] : memref<12x18x16xf32, #tpu.memory_space<vmem>>, vector<12x16x16xf32>
    tpu.vector_store %arg5[%c0_9, %c1, %c0_10], %10 {strides = array<i32>} : memref<12x18x16xf32, #tpu.memory_space<vmem>>, vector<12x16x16xf32>,
    %c0_11 = arith.constant 0 : index
    %c2 = arith.constant 2 : index
    %c0_12 = arith.constant 0 : index
    %12 = vector.load %arg5[%c0_11, %c2, %c0_12] : memref<12x18x16xf32, #tpu.memory_space<vmem>>, vector<12x1x16xf32>
    %c0_13 = arith.constant 0 : index
    %c0_14 = arith.constant 0 : index
    %c0_15 = arith.constant 0 : index
    %13 = vector.load %arg5[%c0_13, %c0_14, %c0_15] : memref<12x18x16xf32, #tpu.memory_space<vmem>>, vector<12x1x16xf32>
    tpu.vector_store %arg5[%c0_13, %c0_14, %c0_15], %12 {strides = array<i32>} : memref<12x18x16xf32, #tpu.memory_space<vmem>>, vector<12x1x16xf32>,
    %c0_16 = arith.constant 0 : index
    %c15 = arith.constant 15 : index
    %c0_17 = arith.constant 0 : index
    %14 = vector.load %arg5[%c0_16, %c15, %c0_17] : memref<12x18x16xf32, #tpu.memory_space<vmem>>, vector<12x1x16xf32>
    %c0_18 = arith.constant 0 : index
    %c17 = arith.constant 17 : index
    %c0_19 = arith.constant 0 : index
    %15 = vector.load %arg5[%c0_18, %c17, %c0_19] : memref<12x18x16xf32, #tpu.memory_space<vmem>>, vector<12x1x16xf32>
    tpu.vector_store %arg5[%c0_18, %c17, %c0_19], %14 {strides = array<i32>} : memref<12x18x16xf32, #tpu.memory_space<vmem>>, vector<12x1x16xf32>,
    %c0_20 = arith.constant 0 : index
    %c0_21 = arith.constant 0 : index
    %c0_22 = arith.constant 0 : index
    %16 = vector.load %arg5[%c0_20, %c0_21, %c0_22] : memref<12x18x16xf32, #tpu.memory_space<vmem>>, vector<12x16x16xf32>
    %cst_23 = arith.constant 0.274068624 : f32
    %17 = vector.broadcast %cst_23 : f32 to vector<12x16x16xf32>
    %18 = arith.mulf %17, %16 : vector<12x16x16xf32>
    %c0_24 = arith.constant 0 : index
    %c1_25 = arith.constant 1 : index
    %c0_26 = arith.constant 0 : index
    %19 = vector.load %arg5[%c0_24, %c1_25, %c0_26] : memref<12x18x16xf32, #tpu.memory_space<vmem>>, vector<12x16x16xf32>
    %cst_27 = arith.constant 0.451862752 : f32
    %20 = vector.broadcast %cst_27 : f32 to vector<12x16x16xf32>
    %21 = arith.mulf %20, %19 : vector<12x16x16xf32>
    %22 = arith.addf %18, %21 : vector<12x16x16xf32>
    %c0_28 = arith.constant 0 : index
    %c2_29 = arith.constant 2 : index
    %c0_30 = arith.constant 0 : index
    %23 = vector.load %arg5[%c0_28, %c2_29, %c0_30] : memref<12x18x16xf32, #tpu.memory_space<vmem>>, vector<12x16x16xf32>
    %cst_31 = arith.constant 0.274068624 : f32
    %24 = vector.broadcast %cst_31 : f32 to vector<12x16x16xf32>
    %25 = arith.mulf %24, %23 : vector<12x16x16xf32>
    %26 = arith.addf %22, %25 : vector<12x16x16xf32>
    %c0_32 = arith.constant 0 : index
    %c0_33 = arith.constant 0 : index
    %c1_34 = arith.constant 1 : index
    %27 = vector.load %arg6[%c0_32, %c0_33, %c1_34] : memref<12x16x18xf32, #tpu.memory_space<vmem>>, vector<12x16x16xf32>
    tpu.vector_store %arg6[%c0_32, %c0_33, %c1_34], %26 {strides = array<i32>} : memref<12x16x18xf32, #tpu.memory_space<vmem>>, vector<12x16x16xf32>,
    %c0_35 = arith.constant 0 : index
    %c0_36 = arith.constant 0 : index
    %c2_37 = arith.constant 2 : index
    %28 = vector.load %arg6[%c0_35, %c0_36, %c2_37] : memref<12x16x18xf32, #tpu.memory_space<vmem>>, vector<12x16x1xf32>
    %c0_38 = arith.constant 0 : index
    %c0_39 = arith.constant 0 : index
    %c0_40 = arith.constant 0 : index
    %29 = vector.load %arg6[%c0_38, %c0_39, %c0_40] : memref<12x16x18xf32, #tpu.memory_space<vmem>>, vector<12x16x1xf32>
    tpu.vector_store %arg6[%c0_38, %c0_39, %c0_40], %28 {strides = array<i32>} : memref<12x16x18xf32, #tpu.memory_space<vmem>>, vector<12x16x1xf32>,
    %c0_41 = arith.constant 0 : index
    %c0_42 = arith.constant 0 : index
    %c15_43 = arith.constant 15 : index
    %30 = vector.load %arg6[%c0_41, %c0_42, %c15_43] : memref<12x16x18xf32, #tpu.memory_space<vmem>>, vector<12x16x1xf32>
    %c0_44 = arith.constant 0 : index
    %c0_45 = arith.constant 0 : index
    %c17_46 = arith.constant 17 : index
    %31 = vector.load %arg6[%c0_44, %c0_45, %c17_46] : memref<12x16x18xf32, #tpu.memory_space<vmem>>, vector<12x16x1xf32>
    tpu.vector_store %arg6[%c0_44, %c0_45, %c17_46], %30 {strides = array<i32>} : memref<12x16x18xf32, #tpu.memory_space<vmem>>, vector<12x16x1xf32>,
    %c0_47 = arith.constant 0 : index
    %c0_48 = arith.constant 0 : index
    %c0_49 = arith.constant 0 : index
    %32 = vector.load %arg6[%c0_47, %c0_48, %c0_49] : memref<12x16x18xf32, #tpu.memory_space<vmem>>, vector<12x16x16xf32>
    %cst_50 = arith.constant 0.274068624 : f32
    %33 = vector.broadcast %cst_50 : f32 to vector<12x16x16xf32>
    %34 = arith.mulf %33, %32 : vector<12x16x16xf32>
    %c0_51 = arith.constant 0 : index
    %c0_52 = arith.constant 0 : index
    %c1_53 = arith.constant 1 : index
    %35 = vector.load %arg6[%c0_51, %c0_52, %c1_53] : memref<12x16x18xf32, #tpu.memory_space<vmem>>, vector<12x16x16xf32>
    %cst_54 = arith.constant 0.451862752 : f32
    %36 = vector.broadcast %cst_54 : f32 to vector<12x16x16xf32>
    %37 = arith.mulf %36, %35 : vector<12x16x16xf32>
    %38 = arith.addf %34, %37 : vector<12x16x16xf32>
    %c0_55 = arith.constant 0 : index
    %c0_56 = arith.constant 0 : index
    %c2_57 = arith.constant 2 : index
    %39 = vector.load %arg6[%c0_55, %c0_56, %c2_57] : memref<12x16x18xf32, #tpu.memory_space<vmem>>, vector<12x16x16xf32>
    %cst_58 = arith.constant 0.274068624 : f32
    %40 = vector.broadcast %cst_58 : f32 to vector<12x16x16xf32>
    %41 = arith.mulf %40, %39 : vector<12x16x16xf32>
    %42 = arith.addf %38, %41 : vector<12x16x16xf32>
    %c0_59 = arith.constant 0 : index
    %c0_60 = arith.constant 0 : index
    %c0_61 = arith.constant 0 : index
    %43 = vector.load %arg4[%c0_59, %c0_60, %c0_61] : memref<12x16x16xf32, #tpu.memory_space<vmem>>, vector<12x16x16xf32>
    tpu.vector_store %arg4[%c0_59, %c0_60, %c0_61], %42 {strides = array<i32>} : memref<12x16x16xf32, #tpu.memory_space<vmem>>, vector<12x16x16xf32>,
    return
  }
  func.func @transform_0(%arg0: i32) -> (i32, i32, i32) {
    %c0_i32 = arith.constant 0 : i32
    %c0_i32_0 = arith.constant 0 : i32
    %c0_i32_1 = arith.constant 0 : i32
    return %arg0, %c0_i32, %c0_i32_0 : i32, i32, i32
  }
  func.func @transform_1(%arg0: i32) -> (i32, i32, i32) {
    %c0_i32 = arith.constant 0 : i32
    %c0_i32_0 = arith.constant 0 : i32
    %c0_i32_1 = arith.constant 0 : i32
    return %arg0, %c0_i32, %c0_i32_0 : i32, i32, i32
  }
  func.func @transform_2(%arg0: i32) -> (i32, i32, i32) {
    %c0_i32 = arith.constant 0 : i32
    %c0_i32_0 = arith.constant 0 : i32
    %c0_i32_1 = arith.constant 0 : i32
    return %arg0, %c0_i32, %c0_i32_0 : i32, i32, i32
  }
  func.func @transform_3(%arg0: i32) -> (i32, i32, i32) {
    %c0_i32 = arith.constant 0 : i32
    %c0_i32_0 = arith.constant 0 : i32
    %c0_i32_1 = arith.constant 0 : i32
    return %arg0, %c0_i32, %c0_i32_0 : i32, i32, i32
  }
}

</mosaic_0001>

<llo_original>
// kernel: tpu_custom_call.1
$region0: #{tpu_custom_call.1}
  #allocation0 [shape = 'u32[]', space=smem, size = 0x4, offset = 0x4, fixed_abs, tag = 'smem constant byte address 0x4 - core index']
  #allocation1 [shape = 'u32[72,128]{1,0:T(1,128)}', space=vmem, size = 0x9000, scoped, tag = 'internal scratch']
  #allocation2 [shape = 'f32[12,18,16]{2,1,0:T(8,128)}', space=vmem, size = 0x24000, scoped, tag = 'scratch operand']
  #allocation3 [shape = 'f32[12,16,18]{2,1,0:T(8,128)}', space=vmem, size = 0x18000, scoped, tag = 'scratch operand']
  %s0 = inlined_call_operand.vmem [shape: f32[12,1,1], index: 0, kind: input, shape index: {}]
  %s1 = inlined_call_operand.vmem [shape: f32[12,1,1], index: 1, kind: input, shape index: {}]
  %s2 = inlined_call_operand.hbm [shape: f32[12,16,16], index: 2, kind: input, shape index: {}]
  %s3 = inlined_call_operand.hbm [shape: f32[12,16,16], index: 3, kind: output, shape index: {}]
  %s4 = sld [smem:[#allocation0]]
  $region26: #{tpu_custom_call.1} parent=0
    _
  %s6 = ssub.s32 1, %s4
  %s7 = scalar_select 0, %s6, %s4
  $region1: #{tpu_custom_call.1} parent=0
    #allocation4 [shape = 'u8[98304]{0}', space=vmem, size = 0x18000, scoped, tag = 'input window, operand 2, single buffered']
    #allocation5 [shape = 's32[1]{0}', space=sflag, size = 0x4, scoped, tag = 'scoped memory for tpu_custom_call.1']
    #allocation6 [shape = 's32[1]{0}', space=sflag, size = 0x4, scoped, tag = 'scoped memory for tpu_custom_call.1']
    #allocation7 [shape = 'u8[98304]{0}', space=vmem, size = 0x18000, scoped, tag = 'output window, operand 0, single buffered']
    %8 = vsyncpa [#allocation5], 0
    %9 = vsyncpa [#allocation6], 0
    // Predicated region
    $region2: #{tpu_custom_call.1} parent=1 // pred_check
      _
    $region3: #{tpu_custom_call.1} parent=1 // pred_check_branch
      %11 = sbr.rel (0) target = $region5
    $region4: #{tpu_custom_call.1} parent=1 // pred_region
      _
    $region5: #{tpu_custom_call.1} parent=1 // pred_fallthru
      _
    // Predicated region
    $region6: #{tpu_custom_call.1} parent=1 // pred_check
      _
    $region7: #{tpu_custom_call.1} parent=1 // pred_check_branch
      %13 = sbr.rel (0) target = $region9
    $region8: #{tpu_custom_call.1} parent=1 // pred_region
      _
    $region9: #{tpu_custom_call.1} parent=1 // pred_fallthru
      _
    // Predicated region
    $region10: #{tpu_custom_call.1} parent=1 // pred_check
      _
    $region11: #{tpu_custom_call.1} parent=1 // pred_check_branch
      %15 = sbr.rel (0) target = $region13
    $region12: #{tpu_custom_call.1} parent=1 // pred_region
      %17 = vsyncadd [#allocation5], 0
      %s18 = sshll.u32 %s2, 4
      %s19 = int_to_ptr.hbm [resolvable:$true] %s18
      %s20 = sshll.u32 [#allocation4], 4
      %s21 = int_to_ptr.vmem [resolvable:$true] %s20
      %26 = dma.hbm_to_vmem [thread:$0]  %s19, 3072, %s21, [#allocation5], 128, 128, 8
    $region13: #{tpu_custom_call.1} parent=1 // pred_fallthru
      _
    // Predicated region
    $region14: #{tpu_custom_call.1} parent=1 // pred_check
      _
    $region15: #{tpu_custom_call.1} parent=1 // pred_check_branch
      %28 = sbr.rel (0) target = $region17
    $region16: #{tpu_custom_call.1} parent=1 // pred_region
      %30 = dma.done [#allocation5], 3072
    $region17: #{tpu_custom_call.1} parent=1 // pred_fallthru
      _
    %v31 = vld [vmem:[#allocation4] sm:$0xff]
    %v32 = vld [vmem:[#allocation4 + $0x8] sm:$0xff]
    %v33 = vld [vmem:[#allocation4 + $0x10] sm:$0xff]
    %v34 = vld [vmem:[#allocation4 + $0x18] sm:$0xff]
    %v35 = vld [vmem:[#allocation4 + $0x20] sm:$0xff]
    %v36 = vld [vmem:[#allocation4 + $0x28] sm:$0xff]
    %v37 = vld [vmem:[#allocation4 + $0x30] sm:$0xff]
    %v38 = vld [vmem:[#allocation4 + $0x38] sm:$0xff]
    %v39 = vld [vmem:[#allocation4 + $0x40] sm:$0xff]
    %v40 = vld [vmem:[#allocation4 + $0x48] sm:$0xff]
    %v41 = vld [vmem:[#allocation4 + $0x50] sm:$0xff]
    %v42 = vld [vmem:[#allocation4 + $0x58] sm:$0xff]
    %v43 = vld [vmem:[#allocation4 + $0x60] sm:$0xff]
    %v44 = vld [vmem:[#allocation4 + $0x68] sm:$0xff]
    %v45 = vld [vmem:[#allocation4 + $0x70] sm:$0xff]
    %v46 = vld [vmem:[#allocation4 + $0x78] sm:$0xff]
    %v47 = vld [vmem:[#allocation4 + $0x80] sm:$0xff]
    %v48 = vld [vmem:[#allocation4 + $0x88] sm:$0xff]
    %v49 = vld [vmem:[#allocation4 + $0x90] sm:$0xff]
    %v50 = vld [vmem:[#allocation4 + $0x98] sm:$0xff]
    %v51 = vld [vmem:[#allocation4 + $0xa0] sm:$0xff]
    %v52 = vld [vmem:[#allocation4 + $0xa8] sm:$0xff]
    %v53 = vld [vmem:[#allocation4 + $0xb0] sm:$0xff]
    %v54 = vld [vmem:[#allocation4 + $0xb8] sm:$0xff]
    %v55 = vld [vmem:[%s1] sm:$0x1]
    %v56 = vld [vmem:[%s1 + $0x1] sm:$0x1]
    %v57 = vld [vmem:[%s1 + $0x2] sm:$0x1]
    %v58 = vld [vmem:[%s1 + $0x3] sm:$0x1]
    %v59 = vld [vmem:[%s1 + $0x4] sm:$0x1]
    %v60 = vld [vmem:[%s1 + $0x5] sm:$0x1]
    %v61 = vld [vmem:[%s1 + $0x6] sm:$0x1]
    %v62 = vld [vmem:[%s1 + $0x7] sm:$0x1]
    %v63 = vld [vmem:[%s1 + $0x8] sm:$0x1]
    %v64 = vld [vmem:[%s1 + $0x9] sm:$0x1]
    %v65 = vld [vmem:[%s1 + $0xa] sm:$0x1]
    %v66 = vld [vmem:[%s1 + $0xb] sm:$0x1]
    %v79 = vperm.slane %v55, 0
    %v80 = vperm.slane %v56, 0
    %v81 = vperm.slane %v57, 0
    %v82 = vperm.slane %v58, 0
    %v83 = vperm.slane %v59, 0
    %v84 = vperm.slane %v60, 0
    %v85 = vperm.slane %v61, 0
    %v86 = vperm.slane %v62, 0
    %v87 = vperm.slane %v63, 0
    %v88 = vperm.slane %v64, 0
    %v89 = vperm.slane %v65, 0
    %v90 = vperm.slane %v66, 0
    %91 = vset.pattern.permute.xlu0 0
    %92 = vperm.xlu0 %91, %v79
    %v93 = vpop.permute.xlu0 %92
    %95 = vset.pattern.permute.xlu0 0
    %96 = vperm.xlu0 %95, %v80
    %v97 = vpop.permute.xlu0 %96
    %99 = vset.pattern.permute.xlu0 0
    %100 = vperm.xlu0 %99, %v81
    %v101 = vpop.permute.xlu0 %100
    %103 = vset.pattern.permute.xlu0 0
    %104 = vperm.xlu0 %103, %v82
    %v105 = vpop.permute.xlu0 %104
    %107 = vset.pattern.permute.xlu0 0
    %108 = vperm.xlu0 %107, %v83
    %v109 = vpop.permute.xlu0 %108
    %111 = vset.pattern.permute.xlu0 0
    %112 = vperm.xlu0 %111, %v84
    %v113 = vpop.permute.xlu0 %112
    %115 = vset.pattern.permute.xlu0 0
    %116 = vperm.xlu0 %115, %v85
    %v117 = vpop.permute.xlu0 %116
    %119 = vset.pattern.permute.xlu0 0
    %120 = vperm.xlu0 %119, %v86
    %v121 = vpop.permute.xlu0 %120
    %123 = vset.pattern.permute.xlu0 0
    %124 = vperm.xlu0 %123, %v87
    %v125 = vpop.permute.xlu0 %124
    %127 = vset.pattern.permute.xlu0 0
    %128 = vperm.xlu0 %127, %v88
    %v129 = vpop.permute.xlu0 %128
    %131 = vset.pattern.permute.xlu0 0
    %132 = vperm.xlu0 %131, %v89
    %v133 = vpop.permute.xlu0 %132
    %135 = vset.pattern.permute.xlu0 0
    %136 = vperm.xlu0 %135, %v90
    %v137 = vpop.permute.xlu0 %136
    %v139 = vmul.f32 %v31, %v93
    %v140 = vmul.f32 %v32, %v93
    %v141 = vmul.f32 %v33, %v97
    %v142 = vmul.f32 %v34, %v97
    %v143 = vmul.f32 %v35, %v101
    %v144 = vmul.f32 %v36, %v101
    %v145 = vmul.f32 %v37, %v105
    %v146 = vmul.f32 %v38, %v105
    %v147 = vmul.f32 %v39, %v109
    %v148 = vmul.f32 %v40, %v109
    %v149 = vmul.f32 %v41, %v113
    %v150 = vmul.f32 %v42, %v113
    %v151 = vmul.f32 %v43, %v117
    %v152 = vmul.f32 %v44, %v117
    %v153 = vmul.f32 %v45, %v121
    %v154 = vmul.f32 %v46, %v121
    %v155 = vmul.f32 %v47, %v125
    %v156 = vmul.f32 %v48, %v125
    %v157 = vmul.f32 %v49, %v129
    %v158 = vmul.f32 %v50, %v129
    %v159 = vmul.f32 %v51, %v133
    %v160 = vmul.f32 %v52, %v133
    %v161 = vmul.f32 %v53, %v137
    %v162 = vmul.f32 %v54, %v137
    %v163 = vld [vmem:[%s0] sm:$0x1]
    %v164 = vld [vmem:[%s0 + $0x1] sm:$0x1]
    %v165 = vld [vmem:[%s0 + $0x2] sm:$0x1]
    %v166 = vld [vmem:[%s0 + $0x3] sm:$0x1]
    %v167 = vld [vmem:[%s0 + $0x4] sm:$0x1]
    %v168 = vld [vmem:[%s0 + $0x5] sm:$0x1]
    %v169 = vld [vmem:[%s0 + $0x6] sm:$0x1]
    %v170 = vld [vmem:[%s0 + $0x7] sm:$0x1]
    %v171 = vld [vmem:[%s0 + $0x8] sm:$0x1]
    %v172 = vld [vmem:[%s0 + $0x9] sm:$0x1]
    %v173 = vld [vmem:[%s0 + $0xa] sm:$0x1]
    %v174 = vld [vmem:[%s0 + $0xb] sm:$0x1]
    %v187 = vperm.slane %v163, 0
    %v188 = vperm.slane %v164, 0
    %v189 = vperm.slane %v165, 0
    %v190 = vperm.slane %v166, 0
    %v191 = vperm.slane %v167, 0
    %v192 = vperm.slane %v168, 0
    %v193 = vperm.slane %v169, 0
    %v194 = vperm.slane %v170, 0
    %v195 = vperm.slane %v171, 0
    %v196 = vperm.slane %v172, 0
    %v197 = vperm.slane %v173, 0
    %v198 = vperm.slane %v174, 0
    %199 = vset.pattern.permute.xlu0 0
    %200 = vperm.xlu0 %199, %v187
    %v201 = vpop.permute.xlu0 %200
    %203 = vset.pattern.permute.xlu0 0
    %204 = vperm.xlu0 %203, %v188
    %v205 = vpop.permute.xlu0 %204
    %207 = vset.pattern.permute.xlu0 0
    %208 = vperm.xlu0 %207, %v189
    %v209 = vpop.permute.xlu0 %208
    %211 = vset.pattern.permute.xlu0 0
    %212 = vperm.xlu0 %211, %v190
    %v213 = vpop.permute.xlu0 %212
    %215 = vset.pattern.permute.xlu0 0
    %216 = vperm.xlu0 %215, %v191
    %v217 = vpop.permute.xlu0 %216
    %219 = vset.pattern.permute.xlu0 0
    %220 = vperm.xlu0 %219, %v192
    %v221 = vpop.permute.xlu0 %220
    %223 = vset.pattern.permute.xlu0 0
    %224 = vperm.xlu0 %223, %v193
    %v225 = vpop.permute.xlu0 %224
    %227 = vset.pattern.permute.xlu0 0
    %228 = vperm.xlu0 %227, %v194
    %v229 = vpop.permute.xlu0 %228
    %231 = vset.pattern.permute.xlu0 0
    %232 = vperm.xlu0 %231, %v195
    %v233 = vpop.permute.xlu0 %232
    %235 = vset.pattern.permute.xlu0 0
    %236 = vperm.xlu0 %235, %v196
    %v237 = vpop.permute.xlu0 %236
    %239 = vset.pattern.permute.xlu0 0
    %240 = vperm.xlu0 %239, %v197
    %v241 = vpop.permute.xlu0 %240
    %243 = vset.pattern.permute.xlu0 0
    %244 = vperm.xlu0 %243, %v198
    %v245 = vpop.permute.xlu0 %244
    %v247 = vadd.f32 %v139, %v201
    %v248 = vadd.f32 %v140, %v201
    %v249 = vadd.f32 %v141, %v205
    %v250 = vadd.f32 %v142, %v205
    %v251 = vadd.f32 %v143, %v209
    %v252 = vadd.f32 %v144, %v209
    %v253 = vadd.f32 %v145, %v213
    %v254 = vadd.f32 %v146, %v213
    %v255 = vadd.f32 %v147, %v217
    %v256 = vadd.f32 %v148, %v217
    %v257 = vadd.f32 %v149, %v221
    %v258 = vadd.f32 %v150, %v221
    %v259 = vadd.f32 %v151, %v225
    %v260 = vadd.f32 %v152, %v225
    %v261 = vadd.f32 %v153, %v229
    %v262 = vadd.f32 %v154, %v229
    %v263 = vadd.f32 %v155, %v233
    %v264 = vadd.f32 %v156, %v233
    %v265 = vadd.f32 %v157, %v237
    %v266 = vadd.f32 %v158, %v237
    %v267 = vadd.f32 %v159, %v241
    %v268 = vadd.f32 %v160, %v241
    %v269 = vadd.f32 %v161, %v245
    %v270 = vadd.f32 %v162, %v245
    %v271 = vmax.f32 %v247, 0.0
    %v272 = vmax.f32 %v248, 0.0
    %v273 = vmax.f32 %v249, 0.0
    %v274 = vmax.f32 %v250, 0.0
    %v275 = vmax.f32 %v251, 0.0
    %v276 = vmax.f32 %v252, 0.0
    %v277 = vmax.f32 %v253, 0.0
    %v278 = vmax.f32 %v254, 0.0
    %v279 = vmax.f32 %v255, 0.0
    %v280 = vmax.f32 %v256, 0.0
    %v281 = vmax.f32 %v257, 0.0
    %v282 = vmax.f32 %v258, 0.0
    %v283 = vmax.f32 %v259, 0.0
    %v284 = vmax.f32 %v260, 0.0
    %v285 = vmax.f32 %v261, 0.0
    %v286 = vmax.f32 %v262, 0.0
    %v287 = vmax.f32 %v263, 0.0
    %v288 = vmax.f32 %v264, 0.0
    %v289 = vmax.f32 %v265, 0.0
    %v290 = vmax.f32 %v266, 0.0
    %v291 = vmax.f32 %v267, 0.0
    %v292 = vmax.f32 %v268, 0.0
    %v293 = vmax.f32 %v269, 0.0
    %v294 = vmax.f32 %v270, 0.0
    %v295 = vmin.f32 %v271, 1.0
    %v296 = vmin.f32 %v272, 1.0
    %v297 = vmin.f32 %v273, 1.0
    %v298 = vmin.f32 %v274, 1.0
    %v299 = vmin.f32 %v275, 1.0
    %v300 = vmin.f32 %v276, 1.0
    %v301 = vmin.f32 %v277, 1.0
    %v302 = vmin.f32 %v278, 1.0
    %v303 = vmin.f32 %v279, 1.0
    %v304 = vmin.f32 %v280, 1.0
    %v305 = vmin.f32 %v281, 1.0
    %v306 = vmin.f32 %v282, 1.0
    %v307 = vmin.f32 %v283, 1.0
    %v308 = vmin.f32 %v284, 1.0
    %v309 = vmin.f32 %v285, 1.0
    %v310 = vmin.f32 %v286, 1.0
    %v311 = vmin.f32 %v287, 1.0
    %v312 = vmin.f32 %v288, 1.0
    %v313 = vmin.f32 %v289, 1.0
    %v314 = vmin.f32 %v290, 1.0
    %v315 = vmin.f32 %v291, 1.0
    %v316 = vmin.f32 %v292, 1.0
    %v317 = vmin.f32 %v293, 1.0
    %v318 = vmin.f32 %v294, 1.0
    %vm319 = vcmask 130048
    %320 = vst.msk [vmem:[#allocation2 + $0x1] sm:$0xff] %vm319, %v295
    %321 = vst.msk [vmem:[#allocation2 + $0x9] sm:$0xff] %vm319, %v296
    %322 = vst.msk [vmem:[#allocation2 + $0x19] sm:$0xff] %vm319, %v297
    %323 = vst.msk [vmem:[#allocation2 + $0x21] sm:$0xff] %vm319, %v298
    %324 = vst.msk [vmem:[#allocation2 + $0x31] sm:$0xff] %vm319, %v299
    %325 = vst.msk [vmem:[#allocation2 + $0x39] sm:$0xff] %vm319, %v300
    %326 = vst.msk [vmem:[#allocation2 + $0x49] sm:$0xff] %vm319, %v301
    %327 = vst.msk [vmem:[#allocation2 + $0x51] sm:$0xff] %vm319, %v302
    %328 = vst.msk [vmem:[#allocation2 + $0x61] sm:$0xff] %vm319, %v303
    %329 = vst.msk [vmem:[#allocation2 + $0x69] sm:$0xff] %vm319, %v304
    %330 = vst.msk [vmem:[#allocation2 + $0x79] sm:$0xff] %vm319, %v305
    %331 = vst.msk [vmem:[#allocation2 + $0x81] sm:$0xff] %vm319, %v306
    %332 = vst.msk [vmem:[#allocation2 + $0x91] sm:$0xff] %vm319, %v307
    %333 = vst.msk [vmem:[#allocation2 + $0x99] sm:$0xff] %vm319, %v308
    %334 = vst.msk [vmem:[#allocation2 + $0xa9] sm:$0xff] %vm319, %v309
    %335 = vst.msk [vmem:[#allocation2 + $0xb1] sm:$0xff] %vm319, %v310
    %336 = vst.msk [vmem:[#allocation2 + $0xc1] sm:$0xff] %vm319, %v311
    %337 = vst.msk [vmem:[#allocation2 + $0xc9] sm:$0xff] %vm319, %v312
    %338 = vst.msk [vmem:[#allocation2 + $0xd9] sm:$0xff] %vm319, %v313
    %339 = vst.msk [vmem:[#allocation2 + $0xe1] sm:$0xff] %vm319, %v314
    %340 = vst.msk [vmem:[#allocation2 + $0xf1] sm:$0xff] %vm319, %v315
    %341 = vst.msk [vmem:[#allocation2 + $0xf9] sm:$0xff] %vm319, %v316
    %342 = vst.msk [vmem:[#allocation2 + $0x109] sm:$0xff] %vm319, %v317
    %343 = vst.msk [vmem:[#allocation2 + $0x111] sm:$0xff] %vm319, %v318
    %v344 = vld [vmem:[#allocation2 + $0x2] sm:$0x1]
    %v345 = vld [vmem:[#allocation2 + $0x1a] sm:$0x1]
    %v346 = vld [vmem:[#allocation2 + $0x32] sm:$0x1]
    %v347 = vld [vmem:[#allocation2 + $0x4a] sm:$0x1]
    %v348 = vld [vmem:[#allocation2 + $0x62] sm:$0x1]
    %v349 = vld [vmem:[#allocation2 + $0x7a] sm:$0x1]
    %v350 = vld [vmem:[#allocation2 + $0x92] sm:$0x1]
    %v351 = vld [vmem:[#allocation2 + $0xaa] sm:$0x1]
    %v352 = vld [vmem:[#allocation2 + $0xc2] sm:$0x1]
    %v353 = vld [vmem:[#allocation2 + $0xda] sm:$0x1]
    %v354 = vld [vmem:[#allocation2 + $0xf2] sm:$0x1]
    %v355 = vld [vmem:[#allocation2 + $0x10a] sm:$0x1]
    %vm356 = vcmask 122880
    %357 = vst.msk [vmem:[#allocation2] sm:$0x1] %vm356, %v344
    %358 = vst.msk [vmem:[#allocation2 + $0x18] sm:$0x1] %vm356, %v345
    %359 = vst.msk [vmem:[#allocation2 + $0x30] sm:$0x1] %vm356, %v346
    %360 = vst.msk [vmem:[#allocation2 + $0x48] sm:$0x1] %vm356, %v347
    %361 = vst.msk [vmem:[#allocation2 + $0x60] sm:$0x1] %vm356, %v348
    %362 = vst.msk [vmem:[#allocation2 + $0x78] sm:$0x1] %vm356, %v349
    %363 = vst.msk [vmem:[#allocation2 + $0x90] sm:$0x1] %vm356, %v350
    %364 = vst.msk [vmem:[#allocation2 + $0xa8] sm:$0x1] %vm356, %v351
    %365 = vst.msk [vmem:[#allocation2 + $0xc0] sm:$0x1] %vm356, %v352
    %366 = vst.msk [vmem:[#allocation2 + $0xd8] sm:$0x1] %vm356, %v353
    %367 = vst.msk [vmem:[#allocation2 + $0xf0] sm:$0x1] %vm356, %v354
    %368 = vst.msk [vmem:[#allocation2 + $0x108] sm:$0x1] %vm356, %v355
    %v369 = vld [vmem:[#allocation2 + $0xf] sm:$0x1]
    %v370 = vld [vmem:[#allocation2 + $0x27] sm:$0x1]
    %v371 = vld [vmem:[#allocation2 + $0x3f] sm:$0x1]
    %v372 = vld [vmem:[#allocation2 + $0x57] sm:$0x1]
    %v373 = vld [vmem:[#allocation2 + $0x6f] sm:$0x1]
    %v374 = vld [vmem:[#allocation2 + $0x87] sm:$0x1]
    %v375 = vld [vmem:[#allocation2 + $0x9f] sm:$0x1]
    %v376 = vld [vmem:[#allocation2 + $0xb7] sm:$0x1]
    %v377 = vld [vmem:[#allocation2 + $0xcf] sm:$0x1]
    %v378 = vld [vmem:[#allocation2 + $0xe7] sm:$0x1]
    %v379 = vld [vmem:[#allocation2 + $0xff] sm:$0x1]
    %v380 = vld [vmem:[#allocation2 + $0x117] sm:$0x1]
    %381 = vst.msk [vmem:[#allocation2 + $0x11] sm:$0x1] %vm356, %v369
    %382 = vst.msk [vmem:[#allocation2 + $0x29] sm:$0x1] %vm356, %v370
    %383 = vst.msk [vmem:[#allocation2 + $0x41] sm:$0x1] %vm356, %v371
    %384 = vst.msk [vmem:[#allocation2 + $0x59] sm:$0x1] %vm356, %v372
    %385 = vst.msk [vmem:[#allocation2 + $0x71] sm:$0x1] %vm356, %v373
    %386 = vst.msk [vmem:[#allocation2 + $0x89] sm:$0x1] %vm356, %v374
    %387 = vst.msk [vmem:[#allocation2 + $0xa1] sm:$0x1] %vm356, %v375
    %388 = vst.msk [vmem:[#allocation2 + $0xb9] sm:$0x1] %vm356, %v376
    %389 = vst.msk [vmem:[#allocation2 + $0xd1] sm:$0x1] %vm356, %v377
    %390 = vst.msk [vmem:[#allocation2 + $0xe9] sm:$0x1] %vm356, %v378
    %391 = vst.msk [vmem:[#allocation2 + $0x101] sm:$0x1] %vm356, %v379
    %392 = vst.msk [vmem:[#allocation2 + $0x119] sm:$0x1] %vm356, %v380
    %v393 = vld [vmem:[#allocation2] sm:$0xff]
    %v394 = vld [vmem:[#allocation2 + $0x8] sm:$0xff]
    %v395 = vld [vmem:[#allocation2 + $0x18] sm:$0xff]
    %v396 = vld [vmem:[#allocation2 + $0x20] sm:$0xff]
    %v397 = vld [vmem:[#allocation2 + $0x30] sm:$0xff]
    %v398 = vld [vmem:[#allocation2 + $0x38] sm:$0xff]
    %v399 = vld [vmem:[#allocation2 + $0x48] sm:$0xff]
    %v400 = vld [vmem:[#allocation2 + $0x50] sm:$0xff]
    %v401 = vld [vmem:[#allocation2 + $0x60] sm:$0xff]
    %v402 = vld [vmem:[#allocation2 + $0x68] sm:$0xff]
    %v403 = vld [vmem:[#allocation2 + $0x78] sm:$0xff]
    %v404 = vld [vmem:[#allocation2 + $0x80] sm:$0xff]
    %v405 = vld [vmem:[#allocation2 + $0x90] sm:$0xff]
    %v406 = vld [vmem:[#allocation2 + $0x98] sm:$0xff]
    %v407 = vld [vmem:[#allocation2 + $0xa8] sm:$0xff]
    %v408 = vld [vmem:[#allocation2 + $0xb0] sm:$0xff]
    %v409 = vld [vmem:[#allocation2 + $0xc0] sm:$0xff]
    %v410 = vld [vmem:[#allocation2 + $0xc8] sm:$0xff]
    %v411 = vld [vmem:[#allocation2 + $0xd8] sm:$0xff]
    %v412 = vld [vmem:[#allocation2 + $0xe0] sm:$0xff]
    %v413 = vld [vmem:[#allocation2 + $0xf0] sm:$0xff]
    %v414 = vld [vmem:[#allocation2 + $0xf8] sm:$0xff]
    %v415 = vld [vmem:[#allocation2 + $0x108] sm:$0xff]
    %v416 = vld [vmem:[#allocation2 + $0x110] sm:$0xff]
    %v417 = vmul.f32 %v393, 0.27406862
    %v418 = vmul.f32 %v394, 0.27406862
    %v419 = vmul.f32 %v395, 0.27406862
    %v420 = vmul.f32 %v396, 0.27406862
    %v421 = vmul.f32 %v397, 0.27406862
    %v422 = vmul.f32 %v398, 0.27406862
    %v423 = vmul.f32 %v399, 0.27406862
    %v424 = vmul.f32 %v400, 0.27406862
    %v425 = vmul.f32 %v401, 0.27406862
    %v426 = vmul.f32 %v402, 0.27406862
    %v427 = vmul.f32 %v403, 0.27406862
    %v428 = vmul.f32 %v404, 0.27406862
    %v429 = vmul.f32 %v405, 0.27406862
    %v430 = vmul.f32 %v406, 0.27406862
    %v431 = vmul.f32 %v407, 0.27406862
    %v432 = vmul.f32 %v408, 0.27406862
    %v433 = vmul.f32 %v409, 0.27406862
    %v434 = vmul.f32 %v410, 0.27406862
    %v435 = vmul.f32 %v411, 0.27406862
    %v436 = vmul.f32 %v412, 0.27406862
    %v437 = vmul.f32 %v413, 0.27406862
    %v438 = vmul.f32 %v414, 0.27406862
    %v439 = vmul.f32 %v415, 0.27406862
    %v440 = vmul.f32 %v416, 0.27406862
    %v441 = vld [vmem:[#allocation2 + $0x1] sm:$0xff]
    %v442 = vld [vmem:[#allocation2 + $0x9] sm:$0xff]
    %v443 = vld [vmem:[#allocation2 + $0x19] sm:$0xff]
    %v444 = vld [vmem:[#allocation2 + $0x21] sm:$0xff]
    %v445 = vld [vmem:[#allocation2 + $0x31] sm:$0xff]
    %v446 = vld [vmem:[#allocation2 + $0x39] sm:$0xff]
    %v447 = vld [vmem:[#allocation2 + $0x49] sm:$0xff]
    %v448 = vld [vmem:[#allocation2 + $0x51] sm:$0xff]
    %v449 = vld [vmem:[#allocation2 + $0x61] sm:$0xff]
    %v450 = vld [vmem:[#allocation2 + $0x69] sm:$0xff]
    %v451 = vld [vmem:[#allocation2 + $0x79] sm:$0xff]
    %v452 = vld [vmem:[#allocation2 + $0x81] sm:$0xff]
    %v453 = vld [vmem:[#allocation2 + $0x91] sm:$0xff]
    %v454 = vld [vmem:[#allocation2 + $0x99] sm:$0xff]
    %v455 = vld [vmem:[#allocation2 + $0xa9] sm:$0xff]
    %v456 = vld [vmem:[#allocation2 + $0xb1] sm:$0xff]
    %v457 = vld [vmem:[#allocation2 + $0xc1] sm:$0xff]
    %v458 = vld [vmem:[#allocation2 + $0xc9] sm:$0xff]
    %v459 = vld [vmem:[#allocation2 + $0xd9] sm:$0xff]
    %v460 = vld [vmem:[#allocation2 + $0xe1] sm:$0xff]
    %v461 = vld [vmem:[#allocation2 + $0xf1] sm:$0xff]
    %v462 = vld [vmem:[#allocation2 + $0xf9] sm:$0xff]
    %v463 = vld [vmem:[#allocation2 + $0x109] sm:$0xff]
    %v464 = vld [vmem:[#allocation2 + $0x111] sm:$0xff]
    %v465 = vmul.f32 %v441, 0.45186275
    %v466 = vmul.f32 %v442, 0.45186275
    %v467 = vmul.f32 %v443, 0.45186275
    %v468 = vmul.f32 %v444, 0.45186275
    %v469 = vmul.f32 %v445, 0.45186275
    %v470 = vmul.f32 %v446, 0.45186275
    %v471 = vmul.f32 %v447, 0.45186275
    %v472 = vmul.f32 %v448, 0.45186275
    %v473 = vmul.f32 %v449, 0.45186275
    %v474 = vmul.f32 %v450, 0.45186275
    %v475 = vmul.f32 %v451, 0.45186275
    %v476 = vmul.f32 %v452, 0.45186275
    %v477 = vmul.f32 %v453, 0.45186275
    %v478 = vmul.f32 %v454, 0.45186275
    %v479 = vmul.f32 %v455, 0.45186275
    %v480 = vmul.f32 %v456, 0.45186275
    %v481 = vmul.f32 %v457, 0.45186275
    %v482 = vmul.f32 %v458, 0.45186275
    %v483 = vmul.f32 %v459, 0.45186275
    %v484 = vmul.f32 %v460, 0.45186275
    %v485 = vmul.f32 %v461, 0.45186275
    %v486 = vmul.f32 %v462, 0.45186275
    %v487 = vmul.f32 %v463, 0.45186275
    %v488 = vmul.f32 %v464, 0.45186275
    %v489 = vadd.f32 %v417, %v465
    %v490 = vadd.f32 %v418, %v466
    %v491 = vadd.f32 %v419, %v467
    %v492 = vadd.f32 %v420, %v468
    %v493 = vadd.f32 %v421, %v469
    %v494 = vadd.f32 %v422, %v470
    %v495 = vadd.f32 %v423, %v471
    %v496 = vadd.f32 %v424, %v472
    %v497 = vadd.f32 %v425, %v473
    %v498 = vadd.f32 %v426, %v474
    %v499 = vadd.f32 %v427, %v475
    %v500 = vadd.f32 %v428, %v476
    %v501 = vadd.f32 %v429, %v477
    %v502 = vadd.f32 %v430, %v478
    %v503 = vadd.f32 %v431, %v479
    %v504 = vadd.f32 %v432, %v480
    %v505 = vadd.f32 %v433, %v481
    %v506 = vadd.f32 %v434, %v482
    %v507 = vadd.f32 %v435, %v483
    %v508 = vadd.f32 %v436, %v484
    %v509 = vadd.f32 %v437, %v485
    %v510 = vadd.f32 %v438, %v486
    %v511 = vadd.f32 %v439, %v487
    %v512 = vadd.f32 %v440, %v488
    %v513 = vld [vmem:[#allocation2 + $0x2] sm:$0xff]
    %v514 = vld [vmem:[#allocation2 + $0xa] sm:$0xff]
    %v515 = vld [vmem:[#allocation2 + $0x1a] sm:$0xff]
    %v516 = vld [vmem:[#allocation2 + $0x22] sm:$0xff]
    %v517 = vld [vmem:[#allocation2 + $0x32] sm:$0xff]
    %v518 = vld [vmem:[#allocation2 + $0x3a] sm:$0xff]
    %v519 = vld [vmem:[#allocation2 + $0x4a] sm:$0xff]
    %v520 = vld [vmem:[#allocation2 + $0x52] sm:$0xff]
    %v521 = vld [vmem:[#allocation2 + $0x62] sm:$0xff]
    %v522 = vld [vmem:[#allocation2 + $0x6a] sm:$0xff]
    %v523 = vld [vmem:[#allocation2 + $0x7a] sm:$0xff]
    %v524 = vld [vmem:[#allocation2 + $0x82] sm:$0xff]
    %v525 = vld [vmem:[#allocation2 + $0x92] sm:$0xff]
    %v526 = vld [vmem:[#allocation2 + $0x9a] sm:$0xff]
    %v527 = vld [vmem:[#allocation2 + $0xaa] sm:$0xff]
    %v528 = vld [vmem:[#allocation2 + $0xb2] sm:$0xff]
    %v529 = vld [vmem:[#allocation2 + $0xc2] sm:$0xff]
    %v530 = vld [vmem:[#allocation2 + $0xca] sm:$0xff]
    %v531 = vld [vmem:[#allocation2 + $0xda] sm:$0xff]
    %v532 = vld [vmem:[#allocation2 + $0xe2] sm:$0xff]
    %v533 = vld [vmem:[#allocation2 + $0xf2] sm:$0xff]
    %v534 = vld [vmem:[#allocation2 + $0xfa] sm:$0xff]
    %v535 = vld [vmem:[#allocation2 + $0x10a] sm:$0xff]
    %v536 = vld [vmem:[#allocation2 + $0x112] sm:$0xff]
    %v537 = vmul.f32 %v513, 0.27406862
    %v538 = vmul.f32 %v514, 0.27406862
    %v539 = vmul.f32 %v515, 0.27406862
    %v540 = vmul.f32 %v516, 0.27406862
    %v541 = vmul.f32 %v517, 0.27406862
    %v542 = vmul.f32 %v518, 0.27406862
    %v543 = vmul.f32 %v519, 0.27406862
    %v544 = vmul.f32 %v520, 0.27406862
    %v545 = vmul.f32 %v521, 0.27406862
    %v546 = vmul.f32 %v522, 0.27406862
    %v547 = vmul.f32 %v523, 0.27406862
    %v548 = vmul.f32 %v524, 0.27406862
    %v549 = vmul.f32 %v525, 0.27406862
    %v550 = vmul.f32 %v526, 0.27406862
    %v551 = vmul.f32 %v527, 0.27406862
    %v552 = vmul.f32 %v528, 0.27406862
    %v553 = vmul.f32 %v529, 0.27406862
    %v554 = vmul.f32 %v530, 0.27406862
    %v555 = vmul.f32 %v531, 0.27406862
    %v556 = vmul.f32 %v532, 0.27406862
    %v557 = vmul.f32 %v533, 0.27406862
    %v558 = vmul.f32 %v534, 0.27406862
    %v559 = vmul.f32 %v535, 0.27406862
    %v560 = vmul.f32 %v536, 0.27406862
    %v561 = vadd.f32 %v489, %v537
    %v562 = vadd.f32 %v490, %v538
    %v563 = vadd.f32 %v491, %v539
    %v564 = vadd.f32 %v492, %v540
    %v565 = vadd.f32 %v493, %v541
    %v566 = vadd.f32 %v494, %v542
    %v567 = vadd.f32 %v495, %v543
    %v568 = vadd.f32 %v496, %v544
    %v569 = vadd.f32 %v497, %v545
    %v570 = vadd.f32 %v498, %v546
    %v571 = vadd.f32 %v499, %v547
    %v572 = vadd.f32 %v500, %v548
    %v573 = vadd.f32 %v501, %v549
    %v574 = vadd.f32 %v502, %v550
    %v575 = vadd.f32 %v503, %v551
    %v576 = vadd.f32 %v504, %v552
    %v577 = vadd.f32 %v505, %v553
    %v578 = vadd.f32 %v506, %v554
    %v579 = vadd.f32 %v507, %v555
    %v580 = vadd.f32 %v508, %v556
    %v581 = vadd.f32 %v509, %v557
    %v582 = vadd.f32 %v510, %v558
    %v583 = vadd.f32 %v511, %v559
    %v584 = vadd.f32 %v512, %v560
    %609 = vrot.lane.b32.xlu0 %v561, 1
    %v610 = vpop.permute.xlu0 %609
    %611 = vrot.lane.b32.xlu0 %v562, 1
    %v612 = vpop.permute.xlu0 %611
    %613 = vrot.lane.b32.xlu0 %v563, 1
    %v614 = vpop.permute.xlu0 %613
    %615 = vrot.lane.b32.xlu0 %v564, 1
    %v616 = vpop.permute.xlu0 %615
    %617 = vrot.lane.b32.xlu0 %v565, 1
    %v618 = vpop.permute.xlu0 %617
    %619 = vrot.lane.b32.xlu0 %v566, 1
    %v620 = vpop.permute.xlu0 %619
    %621 = vrot.lane.b32.xlu0 %v567, 1
    %v622 = vpop.permute.xlu0 %621
    %623 = vrot.lane.b32.xlu0 %v568, 1
    %v624 = vpop.permute.xlu0 %623
    %625 = vrot.lane.b32.xlu0 %v569, 1
    %v626 = vpop.permute.xlu0 %625
    %627 = vrot.lane.b32.xlu0 %v570, 1
    %v628 = vpop.permute.xlu0 %627
    %629 = vrot.lane.b32.xlu0 %v571, 1
    %v630 = vpop.permute.xlu0 %629
    %631 = vrot.lane.b32.xlu0 %v572, 1
    %v632 = vpop.permute.xlu0 %631
    %633 = vrot.lane.b32.xlu0 %v573, 1
    %v634 = vpop.permute.xlu0 %633
    %635 = vrot.lane.b32.xlu0 %v574, 1
    %v636 = vpop.permute.xlu0 %635
    %637 = vrot.lane.b32.xlu0 %v575, 1
    %v638 = vpop.permute.xlu0 %637
    %639 = vrot.lane.b32.xlu0 %v576, 1
    %v640 = vpop.permute.xlu0 %639
    %641 = vrot.lane.b32.xlu0 %v577, 1
    %v642 = vpop.permute.xlu0 %641
    %643 = vrot.lane.b32.xlu0 %v578, 1
    %v644 = vpop.permute.xlu0 %643
    %645 = vrot.lane.b32.xlu0 %v579, 1
    %v646 = vpop.permute.xlu0 %645
    %647 = vrot.lane.b32.xlu0 %v580, 1
    %v648 = vpop.permute.xlu0 %647
    %649 = vrot.lane.b32.xlu0 %v581, 1
    %v650 = vpop.permute.xlu0 %649
    %651 = vrot.lane.b32.xlu0 %v582, 1
    %v652 = vpop.permute.xlu0 %651
    %653 = vrot.lane.b32.xlu0 %v583, 1
    %v654 = vpop.permute.xlu0 %653
    %655 = vrot.lane.b32.xlu0 %v584, 1
    %v656 = vpop.permute.xlu0 %655
    %vm681 = vcmask 138248
    %682 = vst.msk [vmem:[#allocation3] sm:$0xff] %vm681, %v610
    %683 = vst.msk [vmem:[#allocation3 + $0x8] sm:$0xff] %vm681, %v612
    %684 = vst.msk [vmem:[#allocation3 + $0x10] sm:$0xff] %vm681, %v614
    %685 = vst.msk [vmem:[#allocation3 + $0x18] sm:$0xff] %vm681, %v616
    %686 = vst.msk [vmem:[#allocation3 + $0x20] sm:$0xff] %vm681, %v618
    %687 = vst.msk [vmem:[#allocation3 + $0x28] sm:$0xff] %vm681, %v620
    %688 = vst.msk [vmem:[#allocation3 + $0x30] sm:$0xff] %vm681, %v622
    %689 = vst.msk [vmem:[#allocation3 + $0x38] sm:$0xff] %vm681, %v624
    %690 = vst.msk [vmem:[#allocation3 + $0x40] sm:$0xff] %vm681, %v626
    %691 = vst.msk [vmem:[#allocation3 + $0x48] sm:$0xff] %vm681, %v628
    %692 = vst.msk [vmem:[#allocation3 + $0x50] sm:$0xff] %vm681, %v630
    %693 = vst.msk [vmem:[#allocation3 + $0x58] sm:$0xff] %vm681, %v632
    %694 = vst.msk [vmem:[#allocation3 + $0x60] sm:$0xff] %vm681, %v634
    %695 = vst.msk [vmem:[#allocation3 + $0x68] sm:$0xff] %vm681, %v636
    %696 = vst.msk [vmem:[#allocation3 + $0x70] sm:$0xff] %vm681, %v638
    %697 = vst.msk [vmem:[#allocation3 + $0x78] sm:$0xff] %vm681, %v640
    %698 = vst.msk [vmem:[#allocation3 + $0x80] sm:$0xff] %vm681, %v642
    %699 = vst.msk [vmem:[#allocation3 + $0x88] sm:$0xff] %vm681, %v644
    %700 = vst.msk [vmem:[#allocation3 + $0x90] sm:$0xff] %vm681, %v646
    %701 = vst.msk [vmem:[#allocation3 + $0x98] sm:$0xff] %vm681, %v648
    %702 = vst.msk [vmem:[#allocation3 + $0xa0] sm:$0xff] %vm681, %v650
    %703 = vst.msk [vmem:[#allocation3 + $0xa8] sm:$0xff] %vm681, %v652
    %704 = vst.msk [vmem:[#allocation3 + $0xb0] sm:$0xff] %vm681, %v654
    %705 = vst.msk [vmem:[#allocation3 + $0xb8] sm:$0xff] %vm681, %v656
    %v706 = vld [vmem:[#allocation3] sm:$0xff]
    %v707 = vld [vmem:[#allocation3 + $0x8] sm:$0xff]
    %v708 = vld [vmem:[#allocation3 + $0x10] sm:$0xff]
    %v709 = vld [vmem:[#allocation3 + $0x18] sm:$0xff]
    %v710 = vld [vmem:[#allocation3 + $0x20] sm:$0xff]
    %v711 = vld [vmem:[#allocation3 + $0x28] sm:$0xff]
    %v712 = vld [vmem:[#allocation3 + $0x30] sm:$0xff]
    %v713 = vld [vmem:[#allocation3 + $0x38] sm:$0xff]
    %v714 = vld [vmem:[#allocation3 + $0x40] sm:$0xff]
    %v715 = vld [vmem:[#allocation3 + $0x48] sm:$0xff]
    %v716 = vld [vmem:[#allocation3 + $0x50] sm:$0xff]
    %v717 = vld [vmem:[#allocation3 + $0x58] sm:$0xff]
    %v718 = vld [vmem:[#allocation3 + $0x60] sm:$0xff]
    %v719 = vld [vmem:[#allocation3 + $0x68] sm:$0xff]
    %v720 = vld [vmem:[#allocation3 + $0x70] sm:$0xff]
    %v721 = vld [vmem:[#allocation3 + $0x78] sm:$0xff]
    %v722 = vld [vmem:[#allocation3 + $0x80] sm:$0xff]
    %v723 = vld [vmem:[#allocation3 + $0x88] sm:$0xff]
    %v724 = vld [vmem:[#allocation3 + $0x90] sm:$0xff]
    %v725 = vld [vmem:[#allocation3 + $0x98] sm:$0xff]
    %v726 = vld [vmem:[#allocation3 + $0xa0] sm:$0xff]
    %v727 = vld [vmem:[#allocation3 + $0xa8] sm:$0xff]
    %v728 = vld [vmem:[#allocation3 + $0xb0] sm:$0xff]
    %v729 = vld [vmem:[#allocation3 + $0xb8] sm:$0xff]
    %754 = vrot.lane.b32.xlu0 %v706, 126
    %v755 = vpop.permute.xlu0 %754
    %756 = vrot.lane.b32.xlu0 %v707, 126
    %v757 = vpop.permute.xlu0 %756
    %758 = vrot.lane.b32.xlu0 %v708, 126
    %v759 = vpop.permute.xlu0 %758
    %760 = vrot.lane.b32.xlu0 %v709, 126
    %v761 = vpop.permute.xlu0 %760
    %762 = vrot.lane.b32.xlu0 %v710, 126
    %v763 = vpop.permute.xlu0 %762
    %764 = vrot.lane.b32.xlu0 %v711, 126
    %v765 = vpop.permute.xlu0 %764
    %766 = vrot.lane.b32.xlu0 %v712, 126
    %v767 = vpop.permute.xlu0 %766
    %768 = vrot.lane.b32.xlu0 %v713, 126
    %v769 = vpop.permute.xlu0 %768
    %770 = vrot.lane.b32.xlu0 %v714, 126
    %v771 = vpop.permute.xlu0 %770
    %772 = vrot.lane.b32.xlu0 %v715, 126
    %v773 = vpop.permute.xlu0 %772
    %774 = vrot.lane.b32.xlu0 %v716, 126
    %v775 = vpop.permute.xlu0 %774
    %776 = vrot.lane.b32.xlu0 %v717, 126
    %v777 = vpop.permute.xlu0 %776
    %778 = vrot.lane.b32.xlu0 %v718, 126
    %v779 = vpop.permute.xlu0 %778
    %780 = vrot.lane.b32.xlu0 %v719, 126
    %v781 = vpop.permute.xlu0 %780
    %782 = vrot.lane.b32.xlu0 %v720, 126
    %v783 = vpop.permute.xlu0 %782
    %784 = vrot.lane.b32.xlu0 %v721, 126
    %v785 = vpop.permute.xlu0 %784
    %786 = vrot.lane.b32.xlu0 %v722, 126
    %v787 = vpop.permute.xlu0 %786
    %788 = vrot.lane.b32.xlu0 %v723, 126
    %v789 = vpop.permute.xlu0 %788
    %790 = vrot.lane.b32.xlu0 %v724, 126
    %v791 = vpop.permute.xlu0 %790
    %792 = vrot.lane.b32.xlu0 %v725, 126
    %v793 = vpop.permute.xlu0 %792
    %794 = vrot.lane.b32.xlu0 %v726, 126
    %v795 = vpop.permute.xlu0 %794
    %796 = vrot.lane.b32.xlu0 %v727, 126
    %v797 = vpop.permute.xlu0 %796
    %798 = vrot.lane.b32.xlu0 %v728, 126
    %v799 = vpop.permute.xlu0 %798
    %800 = vrot.lane.b32.xlu0 %v729, 126
    %v801 = vpop.permute.xlu0 %800
    %vm826 = vcmask 7168
    %827 = vst.msk [vmem:[#allocation3] sm:$0xff] %vm826, %v755
    %828 = vst.msk [vmem:[#allocation3 + $0x8] sm:$0xff] %vm826, %v757
    %829 = vst.msk [vmem:[#allocation3 + $0x10] sm:$0xff] %vm826, %v759
    %830 = vst.msk [vmem:[#allocation3 + $0x18] sm:$0xff] %vm826, %v761
    %831 = vst.msk [vmem:[#allocation3 + $0x20] sm:$0xff] %vm826, %v763
    %832 = vst.msk [vmem:[#allocation3 + $0x28] sm:$0xff] %vm826, %v765
    %833 = vst.msk [vmem:[#allocation3 + $0x30] sm:$0xff] %vm826, %v767
    %834 = vst.msk [vmem:[#allocation3 + $0x38] sm:$0xff] %vm826, %v769
    %835 = vst.msk [vmem:[#allocation3 + $0x40] sm:$0xff] %vm826, %v771
    %836 = vst.msk [vmem:[#allocation3 + $0x48] sm:$0xff] %vm826, %v773
    %837 = vst.msk [vmem:[#allocation3 + $0x50] sm:$0xff] %vm826, %v775
    %838 = vst.msk [vmem:[#allocation3 + $0x58] sm:$0xff] %vm826, %v777
    %839 = vst.msk [vmem:[#allocation3 + $0x60] sm:$0xff] %vm826, %v779
    %840 = vst.msk [vmem:[#allocation3 + $0x68] sm:$0xff] %vm826, %v781
    %841 = vst.msk [vmem:[#allocation3 + $0x70] sm:$0xff] %vm826, %v783
    %842 = vst.msk [vmem:[#allocation3 + $0x78] sm:$0xff] %vm826, %v785
    %843 = vst.msk [vmem:[#allocation3 + $0x80] sm:$0xff] %vm826, %v787
    %844 = vst.msk [vmem:[#allocation3 + $0x88] sm:$0xff] %vm826, %v789
    %845 = vst.msk [vmem:[#allocation3 + $0x90] sm:$0xff] %vm826, %v791
    %846 = vst.msk [vmem:[#allocation3 + $0x98] sm:$0xff] %vm826, %v793
    %847 = vst.msk [vmem:[#allocation3 + $0xa0] sm:$0xff] %vm826, %v795
    %848 = vst.msk [vmem:[#allocation3 + $0xa8] sm:$0xff] %vm826, %v797
    %849 = vst.msk [vmem:[#allocation3 + $0xb0] sm:$0xff] %vm826, %v799
    %850 = vst.msk [vmem:[#allocation3 + $0xb8] sm:$0xff] %vm826, %v801
    %v851 = vld [vmem:[#allocation3] sm:$0xff]
    %v852 = vld [vmem:[#allocation3 + $0x8] sm:$0xff]
    %v853 = vld [vmem:[#allocation3 + $0x10] sm:$0xff]
    %v854 = vld [vmem:[#allocation3 + $0x18] sm:$0xff]
    %v855 = vld [vmem:[#allocation3 + $0x20] sm:$0xff]
    %v856 = vld [vmem:[#allocation3 + $0x28] sm:$0xff]
    %v857 = vld [vmem:[#allocation3 + $0x30] sm:$0xff]
    %v858 = vld [vmem:[#allocation3 + $0x38] sm:$0xff]
    %v859 = vld [vmem:[#allocation3 + $0x40] sm:$0xff]
    %v860 = vld [vmem:[#allocation3 + $0x48] sm:$0xff]
    %v861 = vld [vmem:[#allocation3 + $0x50] sm:$0xff]
    %v862 = vld [vmem:[#allocation3 + $0x58] sm:$0xff]
    %v863 = vld [vmem:[#allocation3 + $0x60] sm:$0xff]
    %v864 = vld [vmem:[#allocation3 + $0x68] sm:$0xff]
    %v865 = vld [vmem:[#allocation3 + $0x70] sm:$0xff]
    %v866 = vld [vmem:[#allocation3 + $0x78] sm:$0xff]
    %v867 = vld [vmem:[#allocation3 + $0x80] sm:$0xff]
    %v868 = vld [vmem:[#allocation3 + $0x88] sm:$0xff]
    %v869 = vld [vmem:[#allocation3 + $0x90] sm:$0xff]
    %v870 = vld [vmem:[#allocation3 + $0x98] sm:$0xff]
    %v871 = vld [vmem:[#allocation3 + $0xa0] sm:$0xff]
    %v872 = vld [vmem:[#allocation3 + $0xa8] sm:$0xff]
    %v873 = vld [vmem:[#allocation3 + $0xb0] sm:$0xff]
    %v874 = vld [vmem:[#allocation3 + $0xb8] sm:$0xff]
    %899 = vrot.lane.b32.xlu0 %v851, 2
    %v900 = vpop.permute.xlu0 %899
    %901 = vrot.lane.b32.xlu0 %v852, 2
    %v902 = vpop.permute.xlu0 %901
    %903 = vrot.lane.b32.xlu0 %v853, 2
    %v904 = vpop.permute.xlu0 %903
    %905 = vrot.lane.b32.xlu0 %v854, 2
    %v906 = vpop.permute.xlu0 %905
    %907 = vrot.lane.b32.xlu0 %v855, 2
    %v908 = vpop.permute.xlu0 %907
    %909 = vrot.lane.b32.xlu0 %v856, 2
    %v910 = vpop.permute.xlu0 %909
    %911 = vrot.lane.b32.xlu0 %v857, 2
    %v912 = vpop.permute.xlu0 %911
    %913 = vrot.lane.b32.xlu0 %v858, 2
    %v914 = vpop.permute.xlu0 %913
    %915 = vrot.lane.b32.xlu0 %v859, 2
    %v916 = vpop.permute.xlu0 %915
    %917 = vrot.lane.b32.xlu0 %v860, 2
    %v918 = vpop.permute.xlu0 %917
    %919 = vrot.lane.b32.xlu0 %v861, 2
    %v920 = vpop.permute.xlu0 %919
    %921 = vrot.lane.b32.xlu0 %v862, 2
    %v922 = vpop.permute.xlu0 %921
    %923 = vrot.lane.b32.xlu0 %v863, 2
    %v924 = vpop.permute.xlu0 %923
    %925 = vrot.lane.b32.xlu0 %v864, 2
    %v926 = vpop.permute.xlu0 %925
    %927 = vrot.lane.b32.xlu0 %v865, 2
    %v928 = vpop.permute.xlu0 %927
    %929 = vrot.lane.b32.xlu0 %v866, 2
    %v930 = vpop.permute.xlu0 %929
    %931 = vrot.lane.b32.xlu0 %v867, 2
    %v932 = vpop.permute.xlu0 %931
    %933 = vrot.lane.b32.xlu0 %v868, 2
    %v934 = vpop.permute.xlu0 %933
    %935 = vrot.lane.b32.xlu0 %v869, 2
    %v936 = vpop.permute.xlu0 %935
    %937 = vrot.lane.b32.xlu0 %v870, 2
    %v938 = vpop.permute.xlu0 %937
    %939 = vrot.lane.b32.xlu0 %v871, 2
    %v940 = vpop.permute.xlu0 %939
    %941 = vrot.lane.b32.xlu0 %v872, 2
    %v942 = vpop.permute.xlu0 %941
    %943 = vrot.lane.b32.xlu0 %v873, 2
    %v944 = vpop.permute.xlu0 %943
    %945 = vrot.lane.b32.xlu0 %v874, 2
    %v946 = vpop.permute.xlu0 %945
    %vm971 = vcmask 146568
    %972 = vst.msk [vmem:[#allocation3] sm:$0xff] %vm971, %v900
    %973 = vst.msk [vmem:[#allocation3 + $0x8] sm:$0xff] %vm971, %v902
    %974 = vst.msk [vmem:[#allocation3 + $0x10] sm:$0xff] %vm971, %v904
    %975 = vst.msk [vmem:[#allocation3 + $0x18] sm:$0xff] %vm971, %v906
    %976 = vst.msk [vmem:[#allocation3 + $0x20] sm:$0xff] %vm971, %v908
    %977 = vst.msk [vmem:[#allocation3 + $0x28] sm:$0xff] %vm971, %v910
    %978 = vst.msk [vmem:[#allocation3 + $0x30] sm:$0xff] %vm971, %v912
    %979 = vst.msk [vmem:[#allocation3 + $0x38] sm:$0xff] %vm971, %v914
    %980 = vst.msk [vmem:[#allocation3 + $0x40] sm:$0xff] %vm971, %v916
    %981 = vst.msk [vmem:[#allocation3 + $0x48] sm:$0xff] %vm971, %v918
    %982 = vst.msk [vmem:[#allocation3 + $0x50] sm:$0xff] %vm971, %v920
    %983 = vst.msk [vmem:[#allocation3 + $0x58] sm:$0xff] %vm971, %v922
    %984 = vst.msk [vmem:[#allocation3 + $0x60] sm:$0xff] %vm971, %v924
    %985 = vst.msk [vmem:[#allocation3 + $0x68] sm:$0xff] %vm971, %v926
    %986 = vst.msk [vmem:[#allocation3 + $0x70] sm:$0xff] %vm971, %v928
    %987 = vst.msk [vmem:[#allocation3 + $0x78] sm:$0xff] %vm971, %v930
    %988 = vst.msk [vmem:[#allocation3 + $0x80] sm:$0xff] %vm971, %v932
    %989 = vst.msk [vmem:[#allocation3 + $0x88] sm:$0xff] %vm971, %v934
    %990 = vst.msk [vmem:[#allocation3 + $0x90] sm:$0xff] %vm971, %v936
    %991 = vst.msk [vmem:[#allocation3 + $0x98] sm:$0xff] %vm971, %v938
    %992 = vst.msk [vmem:[#allocation3 + $0xa0] sm:$0xff] %vm971, %v940
    %993 = vst.msk [vmem:[#allocation3 + $0xa8] sm:$0xff] %vm971, %v942
    %994 = vst.msk [vmem:[#allocation3 + $0xb0] sm:$0xff] %vm971, %v944
    %995 = vst.msk [vmem:[#allocation3 + $0xb8] sm:$0xff] %vm971, %v946
    %v996 = vld [vmem:[#allocation3] sm:$0xff]
    %v997 = vld [vmem:[#allocation3 + $0x8] sm:$0xff]
    %v998 = vld [vmem:[#allocation3 + $0x10] sm:$0xff]
    %v999 = vld [vmem:[#allocation3 + $0x18] sm:$0xff]
    %v1000 = vld [vmem:[#allocation3 + $0x20] sm:$0xff]
    %v1001 = vld [vmem:[#allocation3 + $0x28] sm:$0xff]
    %v1002 = vld [vmem:[#allocation3 + $0x30] sm:$0xff]
    %v1003 = vld [vmem:[#allocation3 + $0x38] sm:$0xff]
    %v1004 = vld [vmem:[#allocation3 + $0x40] sm:$0xff]
    %v1005 = vld [vmem:[#allocation3 + $0x48] sm:$0xff]
    %v1006 = vld [vmem:[#allocation3 + $0x50] sm:$0xff]
    %v1007 = vld [vmem:[#allocation3 + $0x58] sm:$0xff]
    %v1008 = vld [vmem:[#allocation3 + $0x60] sm:$0xff]
    %v1009 = vld [vmem:[#allocation3 + $0x68] sm:$0xff]
    %v1010 = vld [vmem:[#allocation3 + $0x70] sm:$0xff]
    %v1011 = vld [vmem:[#allocation3 + $0x78] sm:$0xff]
    %v1012 = vld [vmem:[#allocation3 + $0x80] sm:$0xff]
    %v1013 = vld [vmem:[#allocation3 + $0x88] sm:$0xff]
    %v1014 = vld [vmem:[#allocation3 + $0x90] sm:$0xff]
    %v1015 = vld [vmem:[#allocation3 + $0x98] sm:$0xff]
    %v1016 = vld [vmem:[#allocation3 + $0xa0] sm:$0xff]
    %v1017 = vld [vmem:[#allocation3 + $0xa8] sm:$0xff]
    %v1018 = vld [vmem:[#allocation3 + $0xb0] sm:$0xff]
    %v1019 = vld [vmem:[#allocation3 + $0xb8] sm:$0xff]
    %v1020 = vmul.f32 %v996, 0.27406862
    %v1021 = vmul.f32 %v997, 0.27406862
    %v1022 = vmul.f32 %v998, 0.27406862
    %v1023 = vmul.f32 %v999, 0.27406862
    %v1024 = vmul.f32 %v1000, 0.27406862
    %v1025 = vmul.f32 %v1001, 0.27406862
    %v1026 = vmul.f32 %v1002, 0.27406862
    %v1027 = vmul.f32 %v1003, 0.27406862
    %v1028 = vmul.f32 %v1004, 0.27406862
    %v1029 = vmul.f32 %v1005, 0.27406862
    %v1030 = vmul.f32 %v1006, 0.27406862
    %v1031 = vmul.f32 %v1007, 0.27406862
    %v1032 = vmul.f32 %v1008, 0.27406862
    %v1033 = vmul.f32 %v1009, 0.27406862
    %v1034 = vmul.f32 %v1010, 0.27406862
    %v1035 = vmul.f32 %v1011, 0.27406862
    %v1036 = vmul.f32 %v1012, 0.27406862
    %v1037 = vmul.f32 %v1013, 0.27406862
    %v1038 = vmul.f32 %v1014, 0.27406862
    %v1039 = vmul.f32 %v1015, 0.27406862
    %v1040 = vmul.f32 %v1016, 0.27406862
    %v1041 = vmul.f32 %v1017, 0.27406862
    %v1042 = vmul.f32 %v1018, 0.27406862
    %v1043 = vmul.f32 %v1019, 0.27406862
    %v1044 = vmul.f32 %v996, 0.45186275
    %v1045 = vmul.f32 %v997, 0.45186275
    %v1046 = vmul.f32 %v998, 0.45186275
    %v1047 = vmul.f32 %v999, 0.45186275
    %v1048 = vmul.f32 %v1000, 0.45186275
    %v1049 = vmul.f32 %v1001, 0.45186275
    %v1050 = vmul.f32 %v1002, 0.45186275
    %v1051 = vmul.f32 %v1003, 0.45186275
    %v1052 = vmul.f32 %v1004, 0.45186275
    %v1053 = vmul.f32 %v1005, 0.45186275
    %v1054 = vmul.f32 %v1006, 0.45186275
    %v1055 = vmul.f32 %v1007, 0.45186275
    %v1056 = vmul.f32 %v1008, 0.45186275
    %v1057 = vmul.f32 %v1009, 0.45186275
    %v1058 = vmul.f32 %v1010, 0.45186275
    %v1059 = vmul.f32 %v1011, 0.45186275
    %v1060 = vmul.f32 %v1012, 0.45186275
    %v1061 = vmul.f32 %v1013, 0.45186275
    %v1062 = vmul.f32 %v1014, 0.45186275
    %v1063 = vmul.f32 %v1015, 0.45186275
    %v1064 = vmul.f32 %v1016, 0.45186275
    %v1065 = vmul.f32 %v1017, 0.45186275
    %v1066 = vmul.f32 %v1018, 0.45186275
    %v1067 = vmul.f32 %v1019, 0.45186275
    %1092 = vrot.lane.b32.xlu0 %v1044, 127
    %v1093 = vpop.permute.xlu0 %1092
    %1094 = vrot.lane.b32.xlu0 %v1045, 127
    %v1095 = vpop.permute.xlu0 %1094
    %1096 = vrot.lane.b32.xlu0 %v1046, 127
    %v1097 = vpop.permute.xlu0 %1096
    %1098 = vrot.lane.b32.xlu0 %v1047, 127
    %v1099 = vpop.permute.xlu0 %1098
    %1100 = vrot.lane.b32.xlu0 %v1048, 127
    %v1101 = vpop.permute.xlu0 %1100
    %1102 = vrot.lane.b32.xlu0 %v1049, 127
    %v1103 = vpop.permute.xlu0 %1102
    %1104 = vrot.lane.b32.xlu0 %v1050, 127
    %v1105 = vpop.permute.xlu0 %1104
    %1106 = vrot.lane.b32.xlu0 %v1051, 127
    %v1107 = vpop.permute.xlu0 %1106
    %1108 = vrot.lane.b32.xlu0 %v1052, 127
    %v1109 = vpop.permute.xlu0 %1108
    %1110 = vrot.lane.b32.xlu0 %v1053, 127
    %v1111 = vpop.permute.xlu0 %1110
    %1112 = vrot.lane.b32.xlu0 %v1054, 127
    %v1113 = vpop.permute.xlu0 %1112
    %1114 = vrot.lane.b32.xlu0 %v1055, 127
    %v1115 = vpop.permute.xlu0 %1114
    %1116 = vrot.lane.b32.xlu0 %v1056, 127
    %v1117 = vpop.permute.xlu0 %1116
    %1118 = vrot.lane.b32.xlu0 %v1057, 127
    %v1119 = vpop.permute.xlu0 %1118
    %1120 = vrot.lane.b32.xlu0 %v1058, 127
    %v1121 = vpop.permute.xlu0 %1120
    %1122 = vrot.lane.b32.xlu0 %v1059, 127
    %v1123 = vpop.permute.xlu0 %1122
    %1124 = vrot.lane.b32.xlu0 %v1060, 127
    %v1125 = vpop.permute.xlu0 %1124
    %1126 = vrot.lane.b32.xlu0 %v1061, 127
    %v1127 = vpop.permute.xlu0 %1126
    %1128 = vrot.lane.b32.xlu0 %v1062, 127
    %v1129 = vpop.permute.xlu0 %1128
    %1130 = vrot.lane.b32.xlu0 %v1063, 127
    %v1131 = vpop.permute.xlu0 %1130
    %1132 = vrot.lane.b32.xlu0 %v1064, 127
    %v1133 = vpop.permute.xlu0 %1132
    %1134 = vrot.lane.b32.xlu0 %v1065, 127
    %v1135 = vpop.permute.xlu0 %1134
    %1136 = vrot.lane.b32.xlu0 %v1066, 127
    %v1137 = vpop.permute.xlu0 %1136
    %1138 = vrot.lane.b32.xlu0 %v1067, 127
    %v1139 = vpop.permute.xlu0 %1138
    %v1164 = vadd.f32 %v1020, %v1093
    %v1165 = vadd.f32 %v1021, %v1095
    %v1166 = vadd.f32 %v1022, %v1097
    %v1167 = vadd.f32 %v1023, %v1099
    %v1168 = vadd.f32 %v1024, %v1101
    %v1169 = vadd.f32 %v1025, %v1103
    %v1170 = vadd.f32 %v1026, %v1105
    %v1171 = vadd.f32 %v1027, %v1107
    %v1172 = vadd.f32 %v1028, %v1109
    %v1173 = vadd.f32 %v1029, %v1111
    %v1174 = vadd.f32 %v1030, %v1113
    %v1175 = vadd.f32 %v1031, %v1115
    %v1176 = vadd.f32 %v1032, %v1117
    %v1177 = vadd.f32 %v1033, %v1119
    %v1178 = vadd.f32 %v1034, %v1121
    %v1179 = vadd.f32 %v1035, %v1123
    %v1180 = vadd.f32 %v1036, %v1125
    %v1181 = vadd.f32 %v1037, %v1127
    %v1182 = vadd.f32 %v1038, %v1129
    %v1183 = vadd.f32 %v1039, %v1131
    %v1184 = vadd.f32 %v1040, %v1133
    %v1185 = vadd.f32 %v1041, %v1135
    %v1186 = vadd.f32 %v1042, %v1137
    %v1187 = vadd.f32 %v1043, %v1139
    %1212 = vrot.lane.b32.xlu0 %v1020, 126
    %v1213 = vpop.permute.xlu0 %1212
    %1214 = vrot.lane.b32.xlu0 %v1021, 126
    %v1215 = vpop.permute.xlu0 %1214
    %1216 = vrot.lane.b32.xlu0 %v1022, 126
    %v1217 = vpop.permute.xlu0 %1216
    %1218 = vrot.lane.b32.xlu0 %v1023, 126
    %v1219 = vpop.permute.xlu0 %1218
    %1220 = vrot.lane.b32.xlu0 %v1024, 126
    %v1221 = vpop.permute.xlu0 %1220
    %1222 = vrot.lane.b32.xlu0 %v1025, 126
    %v1223 = vpop.permute.xlu0 %1222
    %1224 = vrot.lane.b32.xlu0 %v1026, 126
    %v1225 = vpop.permute.xlu0 %1224
    %1226 = vrot.lane.b32.xlu0 %v1027, 126
    %v1227 = vpop.permute.xlu0 %1226
    %1228 = vrot.lane.b32.xlu0 %v1028, 126
    %v1229 = vpop.permute.xlu0 %1228
    %1230 = vrot.lane.b32.xlu0 %v1029, 126
    %v1231 = vpop.permute.xlu0 %1230
    %1232 = vrot.lane.b32.xlu0 %v1030, 126
    %v1233 = vpop.permute.xlu0 %1232
    %1234 = vrot.lane.b32.xlu0 %v1031, 126
    %v1235 = vpop.permute.xlu0 %1234
    %1236 = vrot.lane.b32.xlu0 %v1032, 126
    %v1237 = vpop.permute.xlu0 %1236
    %1238 = vrot.lane.b32.xlu0 %v1033, 126
    %v1239 = vpop.permute.xlu0 %1238
    %1240 = vrot.lane.b32.xlu0 %v1034, 126
    %v1241 = vpop.permute.xlu0 %1240
    %1242 = vrot.lane.b32.xlu0 %v1035, 126
    %v1243 = vpop.permute.xlu0 %1242
    %1244 = vrot.lane.b32.xlu0 %v1036, 126
    %v1245 = vpop.permute.xlu0 %1244
    %1246 = vrot.lane.b32.xlu0 %v1037, 126
    %v1247 = vpop.permute.xlu0 %1246
    %1248 = vrot.lane.b32.xlu0 %v1038, 126
    %v1249 = vpop.permute.xlu0 %1248
    %1250 = vrot.lane.b32.xlu0 %v1039, 126
    %v1251 = vpop.permute.xlu0 %1250
    %1252 = vrot.lane.b32.xlu0 %v1040, 126
    %v1253 = vpop.permute.xlu0 %1252
    %1254 = vrot.lane.b32.xlu0 %v1041, 126
    %v1255 = vpop.permute.xlu0 %1254
    %1256 = vrot.lane.b32.xlu0 %v1042, 126
    %v1257 = vpop.permute.xlu0 %1256
    %1258 = vrot.lane.b32.xlu0 %v1043, 126
    %v1259 = vpop.permute.xlu0 %1258
    %v1284 = vadd.f32 %v1164, %v1213
    %v1285 = vadd.f32 %v1165, %v1215
    %v1286 = vadd.f32 %v1166, %v1217
    %v1287 = vadd.f32 %v1167, %v1219
    %v1288 = vadd.f32 %v1168, %v1221
    %v1289 = vadd.f32 %v1169, %v1223
    %v1290 = vadd.f32 %v1170, %v1225
    %v1291 = vadd.f32 %v1171, %v1227
    %v1292 = vadd.f32 %v1172, %v1229
    %v1293 = vadd.f32 %v1173, %v1231
    %v1294 = vadd.f32 %v1174, %v1233
    %v1295 = vadd.f32 %v1175, %v1235
    %v1296 = vadd.f32 %v1176, %v1237
    %v1297 = vadd.f32 %v1177, %v1239
    %v1298 = vadd.f32 %v1178, %v1241
    %v1299 = vadd.f32 %v1179, %v1243
    %v1300 = vadd.f32 %v1180, %v1245
    %v1301 = vadd.f32 %v1181, %v1247
    %v1302 = vadd.f32 %v1182, %v1249
    %v1303 = vadd.f32 %v1183, %v1251
    %v1304 = vadd.f32 %v1184, %v1253
    %v1305 = vadd.f32 %v1185, %v1255
    %v1306 = vadd.f32 %v1186, %v1257
    %v1307 = vadd.f32 %v1187, %v1259
    %1308 = vst.msk [vmem:[#allocation7] sm:$0xff] %vm319, %v1284
    %1309 = vst.msk [vmem:[#allocation7 + $0x8] sm:$0xff] %vm319, %v1285
    %1310 = vst.msk [vmem:[#allocation7 + $0x10] sm:$0xff] %vm319, %v1286
    %1311 = vst.msk [vmem:[#allocation7 + $0x18] sm:$0xff] %vm319, %v1287
    %1312 = vst.msk [vmem:[#allocation7 + $0x20] sm:$0xff] %vm319, %v1288
    %1313 = vst.msk [vmem:[#allocation7 + $0x28] sm:$0xff] %vm319, %v1289
    %1314 = vst.msk [vmem:[#allocation7 + $0x30] sm:$0xff] %vm319, %v1290
    %1315 = vst.msk [vmem:[#allocation7 + $0x38] sm:$0xff] %vm319, %v1291
    %1316 = vst.msk [vmem:[#allocation7 + $0x40] sm:$0xff] %vm319, %v1292
    %1317 = vst.msk [vmem:[#allocation7 + $0x48] sm:$0xff] %vm319, %v1293
    %1318 = vst.msk [vmem:[#allocation7 + $0x50] sm:$0xff] %vm319, %v1294
    %1319 = vst.msk [vmem:[#allocation7 + $0x58] sm:$0xff] %vm319, %v1295
    %1320 = vst.msk [vmem:[#allocation7 + $0x60] sm:$0xff] %vm319, %v1296
    %1321 = vst.msk [vmem:[#allocation7 + $0x68] sm:$0xff] %vm319, %v1297
    %1322 = vst.msk [vmem:[#allocation7 + $0x70] sm:$0xff] %vm319, %v1298
    %1323 = vst.msk [vmem:[#allocation7 + $0x78] sm:$0xff] %vm319, %v1299
    %1324 = vst.msk [vmem:[#allocation7 + $0x80] sm:$0xff] %vm319, %v1300
    %1325 = vst.msk [vmem:[#allocation7 + $0x88] sm:$0xff] %vm319, %v1301
    %1326 = vst.msk [vmem:[#allocation7 + $0x90] sm:$0xff] %vm319, %v1302
    %1327 = vst.msk [vmem:[#allocation7 + $0x98] sm:$0xff] %vm319, %v1303
    %1328 = vst.msk [vmem:[#allocation7 + $0xa0] sm:$0xff] %vm319, %v1304
    %1329 = vst.msk [vmem:[#allocation7 + $0xa8] sm:$0xff] %vm319, %v1305
    %1330 = vst.msk [vmem:[#allocation7 + $0xb0] sm:$0xff] %vm319, %v1306
    %1331 = vst.msk [vmem:[#allocation7 + $0xb8] sm:$0xff] %vm319, %v1307
    // Predicated region
    $region18: #{tpu_custom_call.1} parent=1 // pred_check
      _
    $region19: #{tpu_custom_call.1} parent=1 // pred_check_branch
      %1333 = sbr.rel (0) target = $region21
    $region20: #{tpu_custom_call.1} parent=1 // pred_region
      %1335 = vsyncadd [#allocation6], 0
      %s1336 = sshll.u32 [#allocation7], 4
      %s1337 = int_to_ptr.vmem [resolvable:$true] %s1336
      %s1338 = sshll.u32 %s3, 4
      %s1339 = int_to_ptr.hbm [resolvable:$true] %s1338
      %1344 = dma.vmem_to_hbm [thread:$0]  %s1337, 3072, %s1339, [#allocation6], 128, 128, 8
    $region21: #{tpu_custom_call.1} parent=1 // pred_fallthru
      _
    // Predicated region
    $region22: #{tpu_custom_call.1} parent=1 // pred_check
      _
    $region23: #{tpu_custom_call.1} parent=1 // pred_check_branch
      %1346 = sbr.rel (0) target = $region25
    $region24: #{tpu_custom_call.1} parent=1 // pred_region
      %1348 = dma.done [#allocation6], 3072
    $region25: #{tpu_custom_call.1} parent=1 // pred_fallthru
      _
    %1349 = vsyncpa [#allocation5], 1
    %1350 = vsyncpa [#allocation6], 1

</llo_original>
